<compile_context>
chip_gen: v5e
topology: v5e:2x2
jax: 0.10.0
libtpu: 0.0.40
codegen_flags: <defaults>
</compile_context>

<pallas_src>
import jax
import jax.numpy as jnp
from jax.experimental import pallas as pl
from jax.experimental.pallas import tpu as pltpu

BN_EPS = 1e-5
LANES = 128

# bf16 weight slab layout, shape (72, 128):
#   rows  0:16  cols 0:32  -> W2 (16,32)
#   rows 16:48  cols 0:24  -> W3 (32,24)
#   rows 48:72  cols 0:128 -> W4 (24,10) zero-padded to 128 lanes (lane-dense out)
W_ROWS = 72
# f32 vector slab layout, shape (16, 128), rows 0..9 used:
#   0 b1  1 gamma1  2 beta1   3 b2  4 gamma2  5 beta2
#   6 b3  7 gamma3  8 beta3   9 b4 (zero-padded to 128 lanes)
VEC_ROWS = 16


def mlp_kernel(x_ref, w1_ref, ws_ref, v_ref, o_ref, h1_ref):
    i = pl.program_id(0)
    TB = x_ref.shape[0]          # rows per streamed chunk (static)
    B = o_ref.shape[0]           # full batch (static)
    inv_b = 1.0 / B

    # ---------------- phase 1: streamed layer 1 (DMA-overlapped) ------------
    xc = x_ref[...].astype(jnp.bfloat16)                  # in-kernel bf16 cast
    h = jnp.dot(xc, w1_ref[...], preferred_element_type=jnp.float32)
    h = jnp.maximum(h + v_ref[0:1, 0:16], 0.0)            # bias + ReLU (f32)

    if B % TB != 0:
        # Ragged last chunk: rows past the batch read unspecified data from
        # the out-of-bounds block region -- zero them so BN1 stats stay exact.
        rem = B - i * TB
        row = jax.lax.broadcasted_iota(jnp.int32, h.shape, 0)
        h = jnp.where(row < rem, h, 0.0)

    start = i * TB
    if TB % 8 == 0:
        start = pl.multiple_of(start, 8)
    h1_ref[pl.ds(start, TB), :] = h                       # resident activation

    # -------- phase 2 (last step): BN1 + layers 2..4 on resident acts -------
    @pl.when(i == pl.num_programs(0) - 1)
    def _():
        def bn(a, gamma, beta):
            # training-mode BN1d, biased variance, centered two-pass stats,
            # folded epilogue (2 VPU ops / element).
            mean = jnp.sum(a, axis=0, keepdims=True) * inv_b
            d = a - mean
            var = jnp.sum(d * d, axis=0, keepdims=True) * inv_b
            scale = gamma * jax.lax.rsqrt(var + BN_EPS)
            return a * scale + (beta - mean * scale)

        a1 = bn(h1_ref[0:B, :], v_ref[1:2, 0:16], v_ref[2:3, 0:16])

        h2 = jnp.dot(a1.astype(jnp.bfloat16), ws_ref[0:16, 0:32],
                     preferred_element_type=jnp.float32) + v_ref[3:4, 0:32]
        h2 = bn(jnp.maximum(h2, 0.0), v_ref[4:5, 0:32], v_ref[5:6, 0:32])

        h3 = jnp.dot(h2.astype(jnp.bfloat16), ws_ref[16:48, 0:24],
                     preferred_element_type=jnp.float32) + v_ref[6:7, 0:24]
        h3 = bn(jnp.maximum(h3, 0.0), v_ref[7:8, 0:24], v_ref[8:9, 0:24])

        # Linear(24,10): lane-dense, W4/b4 zero-padded to 128 lanes so the
        # final store is a full-width unmasked vst; wrapper slices [:, :10].
        o_ref[...] = (jnp.dot(h3.astype(jnp.bfloat16), ws_ref[48:72, :],
                              preferred_element_type=jnp.float32)
                      + v_ref[9:10, :])


def prepare_params(params):
    """Pack the 14 per-layer tensors into 3 kernel operands:
    W1 bf16 (784,16), bf16 weight slab (72,128), f32 vector slab (16,128)."""
    (w1, b1, g1, be1, w2, b2, g2, be2, w3, b3, g3, be3, w4, b4) = params
    w1_bf16 = jnp.asarray(w1, jnp.float32).astype(jnp.bfloat16)

    wslab = jnp.zeros((W_ROWS, LANES), jnp.bfloat16)
    wslab = wslab.at[0:16, 0:32].set(jnp.asarray(w2, jnp.float32).astype(jnp.bfloat16))
    wslab = wslab.at[16:48, 0:24].set(jnp.asarray(w3, jnp.float32).astype(jnp.bfloat16))
    wslab = wslab.at[48:72, 0:10].set(jnp.asarray(w4, jnp.float32).astype(jnp.bfloat16))

    vec = jnp.zeros((VEC_ROWS, LANES), jnp.float32)
    for i, v in enumerate((b1, g1, be1, b2, g2, be2, b3, g3, be3, b4)):
        v = jnp.asarray(v, jnp.float32).reshape(-1)
        vec = vec.at[i, 0:v.shape[0]].set(v)
    return w1_bf16, wslab, vec


def _vmem_limit_bytes(TB, B, B_pad):
    """Generation-aware VMEM budget with the 128-lane padding of the narrow
    f32 intermediates modeled explicitly."""
    mib = 1024 * 1024
    try:
        cap = int(getattr(pltpu.get_tpu_info(), "vmem_capacity_bytes", 0)) or 64 * mib
    except Exception:
        cap = 64 * mib                       # conservative (v7x physical)
    est = (2 * TB * 784 * 4                  # double-buffered f32 x chunks
           + 2 * 784 * LANES * 2             # W1 (lane-padded to 128), 2 bufs
           + 2 * (W_ROWS * LANES * 2 + VEC_ROWS * LANES * 4)
           + B_pad * LANES * 4               # resident h1 scratch (16->128 pad)
           + 2 * B * LANES * 4               # resident (B,128) f32 output
           + 6 * B * LANES * 4               # epilogue temps (h2/h3/bf16 casts)
           + 2 * mib)                        # misc compiler temporaries
    hard_cap = min((cap * 3) // 4, cap - 20 * mib)   # ~44 MiB v7x, ~96 MiB v5e/v6e
    return int(max(16 * mib, min(hard_cap, est)))


def mlp_forward(x_nchw, prepared, *, chunk_rows=None):
    """x_nchw: (B, 1, 28, 28) float32 -> logits (B, 10) float32.

    The whole batch lives in ONE call (training-mode BN needs full-batch stats
    at every layer); layer 1 is streamed over the batch in TB-row chunks, so
    only the lane-padded (B,128) activation/output must stay resident in VMEM.
    """
    w1_bf16, wslab, vec = prepared
    B = x_nchw.shape[0]
    x = x_nchw.reshape(B, 28 * 28)           # nn.Flatten(); stays f32 (cast in-kernel)

    if chunk_rows is None:
        TB = B if B <= 512 else 512
    else:
        TB = max(8, min(int(chunk_rows), B))
        if TB < B and TB % 8 != 0:
            TB = min(((TB + 7) // 8) * 8, B)  # sublane-aligned block
    nchunks = pl.cdiv(B, TB)
    B_pad = nchunks * TB

    cost = pl.CostEstimate(
        flops=2 * B * (784 * 16 + 16 * 32 + 32 * 24 + 24 * LANES),
        transcendentals=16 + 32 + 24,                          # rsqrt per BN feature
        bytes_accessed=(B * 784 * 4 + 784 * 16 * 2 + W_ROWS * LANES * 2
                        + VEC_ROWS * LANES * 4 + B * LANES * 4))

    grid_spec = pltpu.PrefetchScalarGridSpec(
        num_scalar_prefetch=0,
        grid=(nchunks,),
        in_specs=[
            pl.BlockSpec((TB, 784), lambda i: (i, 0)),          # streamed x chunks
            pl.BlockSpec((784, 16), lambda i: (0, 0)),          # W1 (resident)
            pl.BlockSpec((W_ROWS, LANES), lambda i: (0, 0)),    # bf16 weight slab
            pl.BlockSpec((VEC_ROWS, LANES), lambda i: (0, 0)),  # f32 vector slab
        ],
        out_specs=pl.BlockSpec((B, LANES), lambda i: (0, 0)),   # resident output
        scratch_shapes=[pltpu.VMEM((B_pad, 16), jnp.float32)],  # resident ReLU(h1)
    )

    out = pl.pallas_call(
        mlp_kernel,
        out_shape=jax.ShapeDtypeStruct((B, LANES), jnp.float32),
        grid_spec=grid_spec,
        cost_estimate=cost,
        compiler_params=pltpu.CompilerParams(
            dimension_semantics=("arbitrary",),   # carries scratch + revisits output
            vmem_limit_bytes=_vmem_limit_bytes(TB, B, B_pad)),
    )(x, w1_bf16, wslab, vec)
    return out[:, :10]


def init_params(key):
    """PyTorch-default init: Linear W/b ~ U(-1/sqrt(fan_in), +), BN gamma=1,
    beta=0.  Weights stored (in, out) so the kernel computes x @ W."""
    dims = [(784, 16), (16, 32), (32, 24), (24, 10)]
    lins = []
    keys = jax.random.split(key, 2 * len(dims))
    for i, (fan_in, fan_out) in enumerate(dims):
        bound = 1.0 / jnp.sqrt(jnp.float32(fan_in))
        w = jax.random.uniform(keys[2 * i], (fan_in, fan_out),
                               minval=-bound, maxval=bound, dtype=jnp.float32)
        b = jax.random.uniform(keys[2 * i + 1], (1, fan_out),
                               minval=-bound, maxval=bound, dtype=jnp.float32)
        lins.append((w, b))
    (w1, b1), (w2, b2), (w3, b3), (w4, b4) = lins
    g1, be1 = jnp.ones((1, 16), jnp.float32), jnp.zeros((1, 16), jnp.float32)
    g2, be2 = jnp.ones((1, 32), jnp.float32), jnp.zeros((1, 32), jnp.float32)
    g3, be3 = jnp.ones((1, 24), jnp.float32), jnp.zeros((1, 24), jnp.float32)
    return (w1, b1, g1, be1, w2, b2, g2, be2, w3, b3, g3, be3, w4, b4)


def _ref_block(h, g, be):
    h = jnp.maximum(h, 0.0)
    m = jnp.mean(h, axis=0, keepdims=True)
    v = jnp.mean((h - m) ** 2, axis=0, keepdims=True)
    return (h - m) * jax.lax.rsqrt(v + BN_EPS) * g + be


def mlp_reference(x_nchw, params, *, bf16_matmuls):
    """Pure-JAX reference.  bf16_matmuls=True mirrors the kernel's deliberate
    precision choice (bf16 operands, f32 accumulation, f32 BN); False is the
    exact f32 PyTorch forward."""
    B = x_nchw.shape[0]
    x = x_nchw.reshape(B, -1)
    (w1, b1, g1, be1, w2, b2, g2, be2, w3, b3, g3, be3, w4, b4) = params

    def mm(a, w):
        if bf16_matmuls:
            return jnp.dot(a.astype(jnp.bfloat16), w.astype(jnp.bfloat16),
                           preferred_element_type=jnp.float32)
        return a @ w

    h = _ref_block(mm(x, w1) + b1, g1, be1)
    h = _ref_block(mm(h, w2) + b2, g2, be2)
    h = _ref_block(mm(h, w3) + b3, g3, be3)
    return mm(h, w4) + b4


def _check(out, x, params):
    ref_bf16 = mlp_reference(x, params, bf16_matmuls=True)
    assert jnp.allclose(out, ref_bf16, atol=2e-2, rtol=2e-2), "mismatch vs bf16 reference"
    ref_f32 = mlp_reference(x, params, bf16_matmuls=False)
    assert jnp.allclose(out, ref_f32, atol=2e-1, rtol=2e-1), "drifted from f32 semantics"


if __name__ == "__main__":
    key = jax.random.PRNGKey(0)
    k_param, k_x1, k_x2 = jax.random.split(key, 3)

    params = init_params(k_param)
    prepared = prepare_params(params)

    # Small default-path run (single chunk): B=8, NCHW input like MNIST.
    x1 = jax.random.normal(k_x1, (8, 1, 28, 28), dtype=jnp.float32)
    out1 = jax.block_until_ready(mlp_forward(x1, prepared))
    assert out1.shape == (8, 10)
    _check(out1, x1, params)

    # Exercise the streamed/pipelined path: B=40 with 16-row chunks
    # (3 grid steps, ragged last chunk -> masking + resident-scratch path).
    x2 = jax.random.normal(k_x2, (40, 1, 28, 28), dtype=jnp.float32)
    out2 = jax.block_until_ready(mlp_forward(x2, prepared, chunk_rows=16))
    assert out2.shape == (40, 10)
    _check(out2, x2, params)

    print("KERNEL_OK")
</pallas_src>

<mosaic_0001>
module attributes {stable_mosaic.version = 11 : i64} {
  func.func @mlp_kernel(%arg0: i32, %arg1: memref<8x784xf32, #tpu.memory_space<vmem>>, %arg2: memref<784x16xbf16, #tpu.memory_space<vmem>>, %arg3: memref<72x128xbf16, #tpu.memory_space<vmem>>, %arg4: memref<16x128xf32, #tpu.memory_space<vmem>>, %arg5: memref<8x128xf32, #tpu.memory_space<vmem>>, %arg6: memref<8x16xf32, #tpu.memory_space<vmem>>) attributes {dimension_semantics = [#tpu.dimension_semantics<arbitrary>], iteration_bounds = array<i64: 1>, scalar_prefetch = 0 : i64, scratch_operands = 1 : i64, tpu.core_type = #tpu.core_type<tc>, window_params = [{transform_indices = @transform_0, window_bounds = array<i64: 8, 784>}, {pipeline_mode = #tpu.pipeline_mode<synchronous>, transform_indices = @transform_1, window_bounds = array<i64: 784, 16>}, {pipeline_mode = #tpu.pipeline_mode<synchronous>, transform_indices = @transform_2, window_bounds = array<i64: 72, 128>}, {pipeline_mode = #tpu.pipeline_mode<synchronous>, transform_indices = @transform_3, window_bounds = array<i64: 16, 128>}, {pipeline_mode = #tpu.pipeline_mode<synchronous>, transform_indices = @transform_4, window_bounds = array<i64: 8, 128>}]} {
    %c0 = arith.constant 0 : index
    %c0_0 = arith.constant 0 : index
    %0 = vector.load %arg1[%c0, %c0_0] : memref<8x784xf32, #tpu.memory_space<vmem>>, vector<8x784xf32>
    %1 = arith.truncf %0 : vector<8x784xf32> to vector<8x784xbf16>
    %c0_1 = arith.constant 0 : index
    %c0_2 = arith.constant 0 : index
    %2 = vector.load %arg2[%c0_1, %c0_2] : memref<784x16xbf16, #tpu.memory_space<vmem>>, vector<784x16xbf16>
    %cst = arith.constant dense<0.000000e+00> : vector<8x16xf32>
    %3 = tpu.matmul %1, %2, %cst {dimension_numbers = #tpu.dot_dimension_numbers<[1], [0], [0], [1], [0, 0, 1, 1], [], []>} : vector<8x784xbf16>, vector<784x16xbf16>, vector<8x16xf32> -> vector<8x16xf32>
    %c0_3 = arith.constant 0 : index
    %c0_4 = arith.constant 0 : index
    %4 = vector.load %arg4[%c0_3, %c0_4] : memref<16x128xf32, #tpu.memory_space<vmem>>, vector<1x16xf32>
    %5 = vector.broadcast %4 : vector<1x16xf32> to vector<8x16xf32>
    %6 = arith.addf %3, %5 : vector<8x16xf32>
    %cst_5 = arith.constant 0.000000e+00 : f32
    %7 = vector.broadcast %cst_5 : f32 to vector<8x16xf32>
    %8 = arith.maximumf %6, %7 : vector<8x16xf32>
    %c8_i32 = arith.constant 8 : i32
    %9 = arith.muli %arg0, %c8_i32 : i32
    %10 = tpu.assume_multiple %9, 8 : i32
    %11 = arith.index_cast %10 : i32 to index
    %c0_6 = arith.constant 0 : index
    %12 = vector.load %arg6[%11, %c0_6] : memref<8x16xf32, #tpu.memory_space<vmem>>, vector<8x16xf32>
    tpu.vector_store %arg6[%11, %c0_6], %8 {strides = array<i32>} : memref<8x16xf32, #tpu.memory_space<vmem>>, vector<8x16xf32>,
    %c0_i32 = arith.constant 0 : i32
    %13 = arith.cmpi eq, %arg0, %c0_i32 : i32
    %14 = arith.extui %13 : i1 to i32
    %c0_i32_7 = arith.constant 0 : i32
    %15 = arith.cmpi ne, %14, %c0_i32_7 : i32
    scf.if %15 {
      %c0_8 = arith.constant 0 : index
      %c0_9 = arith.constant 0 : index
      %16 = vector.load %arg6[%c0_8, %c0_9] : memref<8x16xf32, #tpu.memory_space<vmem>>, vector<8x16xf32>
      %c1 = arith.constant 1 : index
      %c0_10 = arith.constant 0 : index
      %17 = vector.load %arg4[%c1, %c0_10] : memref<16x128xf32, #tpu.memory_space<vmem>>, vector<1x16xf32>
      %c2 = arith.constant 2 : index
      %c0_11 = arith.constant 0 : index
      %18 = vector.load %arg4[%c2, %c0_11] : memref<16x128xf32, #tpu.memory_space<vmem>>, vector<1x16xf32>
      %cst_12 = arith.constant dense<0.000000e+00> : vector<16xf32>
      %19 = vector.multi_reduction <add>, %16, %cst_12 [0] : vector<8x16xf32> to vector<16xf32>
      %20 = vector.shape_cast %19 : vector<16xf32> to vector<1x16xf32>
      %cst_13 = arith.constant 1.250000e-01 : f32
      %21 = vector.broadcast %cst_13 : f32 to vector<1x16xf32>
      %22 = arith.mulf %20, %21 : vector<1x16xf32>
      %23 = vector.broadcast %22 : vector<1x16xf32> to vector<8x16xf32>
      %24 = arith.subf %16, %23 : vector<8x16xf32>
      %25 = arith.mulf %24, %24 : vector<8x16xf32>
      %cst_14 = arith.constant dense<0.000000e+00> : vector<16xf32>
      %26 = vector.multi_reduction <add>, %25, %cst_14 [0] : vector<8x16xf32> to vector<16xf32>
      %27 = vector.shape_cast %26 : vector<16xf32> to vector<1x16xf32>
      %cst_15 = arith.constant 1.250000e-01 : f32
      %28 = vector.broadcast %cst_15 : f32 to vector<1x16xf32>
      %29 = arith.mulf %27, %28 : vector<1x16xf32>
      %cst_16 = arith.constant 9.99999974E-6 : f32
      %30 = vector.broadcast %cst_16 : f32 to vector<1x16xf32>
      %31 = arith.addf %29, %30 : vector<1x16xf32>
      %32 = math.rsqrt %31 : vector<1x16xf32>
      %33 = arith.mulf %17, %32 : vector<1x16xf32>
      %34 = vector.broadcast %33 : vector<1x16xf32> to vector<8x16xf32>
      %35 = arith.mulf %16, %34 : vector<8x16xf32>
      %36 = arith.mulf %22, %33 : vector<1x16xf32>
      %37 = arith.subf %18, %36 : vector<1x16xf32>
      %38 = vector.broadcast %37 : vector<1x16xf32> to vector<8x16xf32>
      %39 = arith.addf %35, %38 : vector<8x16xf32>
      %40 = arith.truncf %39 : vector<8x16xf32> to vector<8x16xbf16>
      %c0_17 = arith.constant 0 : index
      %c0_18 = arith.constant 0 : index
      %41 = vector.load %arg3[%c0_17, %c0_18] : memref<72x128xbf16, #tpu.memory_space<vmem>>, vector<16x32xbf16>
      %cst_19 = arith.constant dense<0.000000e+00> : vector<8x32xf32>
      %42 = tpu.matmul %40, %41, %cst_19 {dimension_numbers = #tpu.dot_dimension_numbers<[1], [0], [0], [1], [0, 0, 1, 1], [], []>} : vector<8x16xbf16>, vector<16x32xbf16>, vector<8x32xf32> -> vector<8x32xf32>
      %c3 = arith.constant 3 : index
      %c0_20 = arith.constant 0 : index
      %43 = vector.load %arg4[%c3, %c0_20] : memref<16x128xf32, #tpu.memory_space<vmem>>, vector<1x32xf32>
      %44 = vector.broadcast %43 : vector<1x32xf32> to vector<8x32xf32>
      %45 = arith.addf %42, %44 : vector<8x32xf32>
      %cst_21 = arith.constant 0.000000e+00 : f32
      %46 = vector.broadcast %cst_21 : f32 to vector<8x32xf32>
      %47 = arith.maximumf %45, %46 : vector<8x32xf32>
      %c4 = arith.constant 4 : index
      %c0_22 = arith.constant 0 : index
      %48 = vector.load %arg4[%c4, %c0_22] : memref<16x128xf32, #tpu.memory_space<vmem>>, vector<1x32xf32>
      %c5 = arith.constant 5 : index
      %c0_23 = arith.constant 0 : index
      %49 = vector.load %arg4[%c5, %c0_23] : memref<16x128xf32, #tpu.memory_space<vmem>>, vector<1x32xf32>
      %cst_24 = arith.constant dense<0.000000e+00> : vector<32xf32>
      %50 = vector.multi_reduction <add>, %47, %cst_24 [0] : vector<8x32xf32> to vector<32xf32>
      %51 = vector.shape_cast %50 : vector<32xf32> to vector<1x32xf32>
      %cst_25 = arith.constant 1.250000e-01 : f32
      %52 = vector.broadcast %cst_25 : f32 to vector<1x32xf32>
      %53 = arith.mulf %51, %52 : vector<1x32xf32>
      %54 = vector.broadcast %53 : vector<1x32xf32> to vector<8x32xf32>
      %55 = arith.subf %47, %54 : vector<8x32xf32>
      %56 = arith.mulf %55, %55 : vector<8x32xf32>
      %cst_26 = arith.constant dense<0.000000e+00> : vector<32xf32>
      %57 = vector.multi_reduction <add>, %56, %cst_26 [0] : vector<8x32xf32> to vector<32xf32>
      %58 = vector.shape_cast %57 : vector<32xf32> to vector<1x32xf32>
      %cst_27 = arith.constant 1.250000e-01 : f32
      %59 = vector.broadcast %cst_27 : f32 to vector<1x32xf32>
      %60 = arith.mulf %58, %59 : vector<1x32xf32>
      %cst_28 = arith.constant 9.99999974E-6 : f32
      %61 = vector.broadcast %cst_28 : f32 to vector<1x32xf32>
      %62 = arith.addf %60, %61 : vector<1x32xf32>
      %63 = math.rsqrt %62 : vector<1x32xf32>
      %64 = arith.mulf %48, %63 : vector<1x32xf32>
      %65 = vector.broadcast %64 : vector<1x32xf32> to vector<8x32xf32>
      %66 = arith.mulf %47, %65 : vector<8x32xf32>
      %67 = arith.mulf %53, %64 : vector<1x32xf32>
      %68 = arith.subf %49, %67 : vector<1x32xf32>
      %69 = vector.broadcast %68 : vector<1x32xf32> to vector<8x32xf32>
      %70 = arith.addf %66, %69 : vector<8x32xf32>
      %71 = arith.truncf %70 : vector<8x32xf32> to vector<8x32xbf16>
      %c16 = arith.constant 16 : index
      %c0_29 = arith.constant 0 : index
      %72 = vector.load %arg3[%c16, %c0_29] : memref<72x128xbf16, #tpu.memory_space<vmem>>, vector<32x24xbf16>
      %cst_30 = arith.constant dense<0.000000e+00> : vector<8x24xf32>
      %73 = tpu.matmul %71, %72, %cst_30 {dimension_numbers = #tpu.dot_dimension_numbers<[1], [0], [0], [1], [0, 0, 1, 1], [], []>} : vector<8x32xbf16>, vector<32x24xbf16>, vector<8x24xf32> -> vector<8x24xf32>
      %c6 = arith.constant 6 : index
      %c0_31 = arith.constant 0 : index
      %74 = vector.load %arg4[%c6, %c0_31] : memref<16x128xf32, #tpu.memory_space<vmem>>, vector<1x24xf32>
      %75 = vector.broadcast %74 : vector<1x24xf32> to vector<8x24xf32>
      %76 = arith.addf %73, %75 : vector<8x24xf32>
      %cst_32 = arith.constant 0.000000e+00 : f32
      %77 = vector.broadcast %cst_32 : f32 to vector<8x24xf32>
      %78 = arith.maximumf %76, %77 : vector<8x24xf32>
      %c7 = arith.constant 7 : index
      %c0_33 = arith.constant 0 : index
      %79 = vector.load %arg4[%c7, %c0_33] : memref<16x128xf32, #tpu.memory_space<vmem>>, vector<1x24xf32>
      %c8 = arith.constant 8 : index
      %c0_34 = arith.constant 0 : index
      %80 = vector.load %arg4[%c8, %c0_34] : memref<16x128xf32, #tpu.memory_space<vmem>>, vector<1x24xf32>
      %cst_35 = arith.constant dense<0.000000e+00> : vector<24xf32>
      %81 = vector.multi_reduction <add>, %78, %cst_35 [0] : vector<8x24xf32> to vector<24xf32>
      %82 = vector.shape_cast %81 : vector<24xf32> to vector<1x24xf32>
      %cst_36 = arith.constant 1.250000e-01 : f32
      %83 = vector.broadcast %cst_36 : f32 to vector<1x24xf32>
      %84 = arith.mulf %82, %83 : vector<1x24xf32>
      %85 = vector.broadcast %84 : vector<1x24xf32> to vector<8x24xf32>
      %86 = arith.subf %78, %85 : vector<8x24xf32>
      %87 = arith.mulf %86, %86 : vector<8x24xf32>
      %cst_37 = arith.constant dense<0.000000e+00> : vector<24xf32>
      %88 = vector.multi_reduction <add>, %87, %cst_37 [0] : vector<8x24xf32> to vector<24xf32>
      %89 = vector.shape_cast %88 : vector<24xf32> to vector<1x24xf32>
      %cst_38 = arith.constant 1.250000e-01 : f32
      %90 = vector.broadcast %cst_38 : f32 to vector<1x24xf32>
      %91 = arith.mulf %89, %90 : vector<1x24xf32>
      %cst_39 = arith.constant 9.99999974E-6 : f32
      %92 = vector.broadcast %cst_39 : f32 to vector<1x24xf32>
      %93 = arith.addf %91, %92 : vector<1x24xf32>
      %94 = math.rsqrt %93 : vector<1x24xf32>
      %95 = arith.mulf %79, %94 : vector<1x24xf32>
      %96 = vector.broadcast %95 : vector<1x24xf32> to vector<8x24xf32>
      %97 = arith.mulf %78, %96 : vector<8x24xf32>
      %98 = arith.mulf %84, %95 : vector<1x24xf32>
      %99 = arith.subf %80, %98 : vector<1x24xf32>
      %100 = vector.broadcast %99 : vector<1x24xf32> to vector<8x24xf32>
      %101 = arith.addf %97, %100 : vector<8x24xf32>
      %102 = arith.truncf %101 : vector<8x24xf32> to vector<8x24xbf16>
      %c48 = arith.constant 48 : index
      %c0_40 = arith.constant 0 : index
      %103 = vector.load %arg3[%c48, %c0_40] : memref<72x128xbf16, #tpu.memory_space<vmem>>, vector<24x128xbf16>
      %cst_41 = arith.constant dense<0.000000e+00> : vector<8x128xf32>
      %104 = tpu.matmul %102, %103, %cst_41 {dimension_numbers = #tpu.dot_dimension_numbers<[1], [0], [0], [1], [0, 0, 1, 1], [], []>} : vector<8x24xbf16>, vector<24x128xbf16>, vector<8x128xf32> -> vector<8x128xf32>
      %c9 = arith.constant 9 : index
      %c0_42 = arith.constant 0 : index
      %105 = vector.load %arg4[%c9, %c0_42] : memref<16x128xf32, #tpu.memory_space<vmem>>, vector<1x128xf32>
      %106 = vector.broadcast %105 : vector<1x128xf32> to vector<8x128xf32>
      %107 = arith.addf %104, %106 : vector<8x128xf32>
      %c0_43 = arith.constant 0 : index
      %c0_44 = arith.constant 0 : index
      %108 = vector.load %arg5[%c0_43, %c0_44] : memref<8x128xf32, #tpu.memory_space<vmem>>, vector<8x128xf32>
      tpu.vector_store %arg5[%c0_43, %c0_44], %107 {strides = array<i32>} : memref<8x128xf32, #tpu.memory_space<vmem>>, vector<8x128xf32>,
    } else {
    }
    return
  }
  func.func @transform_0(%arg0: i32) -> (i32, i32) {
    %c0_i32 = arith.constant 0 : i32
    %c0_i32_0 = arith.constant 0 : i32
    return %arg0, %c0_i32 : i32, i32
  }
  func.func @transform_1(%arg0: i32) -> (i32, i32) {
    %c0_i32 = arith.constant 0 : i32
    %c0_i32_0 = arith.constant 0 : i32
    %c0_i32_1 = arith.constant 0 : i32
    return %c0_i32, %c0_i32_0 : i32, i32
  }
  func.func @transform_2(%arg0: i32) -> (i32, i32) {
    %c0_i32 = arith.constant 0 : i32
    %c0_i32_0 = arith.constant 0 : i32
    %c0_i32_1 = arith.constant 0 : i32
    return %c0_i32, %c0_i32_0 : i32, i32
  }
  func.func @transform_3(%arg0: i32) -> (i32, i32) {
    %c0_i32 = arith.constant 0 : i32
    %c0_i32_0 = arith.constant 0 : i32
    %c0_i32_1 = arith.constant 0 : i32
    return %c0_i32, %c0_i32_0 : i32, i32
  }
  func.func @transform_4(%arg0: i32) -> (i32, i32) {
    %c0_i32 = arith.constant 0 : i32
    %c0_i32_0 = arith.constant 0 : i32
    %c0_i32_1 = arith.constant 0 : i32
    return %c0_i32, %c0_i32_0 : i32, i32
  }
}

</mosaic_0001>

<llo_original>
// kernel: tpu_custom_call.1
$region0: #{tpu_custom_call.1}
  #allocation0 [shape = 'u32[]', space=smem, size = 0x4, offset = 0x4, fixed_abs, tag = 'smem constant byte address 0x4 - core index']
  #allocation1 [shape = 'u32[72,128]{1,0:T(1,128)}', space=vmem, size = 0x9000, scoped, tag = 'internal scratch']
  #allocation2 [shape = 'f32[8,16]{1,0:T(8,128)}', space=vmem, size = 0x1000, scoped, tag = 'scratch operand']
  %s0 = inlined_call_operand.vmem [shape: f32[8,784], index: 0, kind: input, shape index: {}]
  %s1 = inlined_call_operand.vmem [shape: bf16[784,16], index: 1, kind: input, shape index: {}]
  %s2 = inlined_call_operand.vmem [shape: bf16[72,128], index: 2, kind: input, shape index: {}]
  %s3 = inlined_call_operand.vmem [shape: f32[16,128], index: 3, kind: input, shape index: {}]
  %s4 = inlined_call_operand.hbm [shape: f32[8,128], index: 4, kind: output, shape index: {}]
  %s5 = sld [smem:[#allocation0]]
  $region30: #{tpu_custom_call.1} parent=0
    _
  %s7 = ssub.s32 1, %s5
  %s8 = scalar_select 0, %s7, %s5
  $region1: #{tpu_custom_call.1} parent=0
    #allocation3 [shape = 'u8[4096]{0}', space=vmem, size = 0x1000, scoped, tag = 'output window, operand 0, single buffered']
    #allocation4 [shape = 's32[1]{0}', space=sflag, size = 0x4, scoped, tag = 'scoped memory for tpu_custom_call.1']
    %9 = vsyncpa [#allocation4], 0
    // Predicated region
    $region2: #{tpu_custom_call.1} parent=1 // pred_check
      _
    $region3: #{tpu_custom_call.1} parent=1 // pred_check_branch
      %11 = sbr.rel (0) target = $region5
    $region4: #{tpu_custom_call.1} parent=1 // pred_region
      _
    $region5: #{tpu_custom_call.1} parent=1 // pred_fallthru
      _
    // Predicated region
    $region6: #{tpu_custom_call.1} parent=1 // pred_check
      _
    $region7: #{tpu_custom_call.1} parent=1 // pred_check_branch
      %13 = sbr.rel (0) target = $region9
    $region8: #{tpu_custom_call.1} parent=1 // pred_region
      _
    $region9: #{tpu_custom_call.1} parent=1 // pred_fallthru
      _
    // Predicated region
    $region10: #{tpu_custom_call.1} parent=1 // pred_check
      _
    $region11: #{tpu_custom_call.1} parent=1 // pred_check_branch
      %15 = sbr.rel (0) target = $region13
    $region12: #{tpu_custom_call.1} parent=1 // pred_region
      _
    $region13: #{tpu_custom_call.1} parent=1 // pred_fallthru
      _
    // Predicated region
    $region14: #{tpu_custom_call.1} parent=1 // pred_check
      _
    $region15: #{tpu_custom_call.1} parent=1 // pred_check_branch
      %17 = sbr.rel (0) target = $region17
    $region16: #{tpu_custom_call.1} parent=1 // pred_region
      _
    $region17: #{tpu_custom_call.1} parent=1 // pred_fallthru
      _
    %v19 = vld [vmem:[%s0] sm:$0xff]
    %v20 = vld [vmem:[%s0 + $0x8] sm:$0xff]
    %v21 = vld [vmem:[%s0 + $0x10] sm:$0xff]
    %v22 = vld [vmem:[%s0 + $0x18] sm:$0xff]
    %v23 = vld [vmem:[%s0 + $0x20] sm:$0xff]
    %v24 = vld [vmem:[%s0 + $0x28] sm:$0xff]
    %v25 = vld [vmem:[%s0 + $0x30] sm:$0xff]
    %v26 = vpack.c.bf16 %v19, %v19
    %v27 = vpack.c.bf16 %v20, %v20
    %v28 = vpack.c.bf16 %v21, %v21
    %v29 = vpack.c.bf16 %v22, %v22
    %v30 = vpack.c.bf16 %v23, %v23
    %v31 = vpack.c.bf16 %v24, %v24
    %v32 = vpack.c.bf16 %v25, %v25
    %v33 = vld [vmem:[%s1] sm:$0xf]
    %v34 = vld [vmem:[%s1 + $0x4] sm:$0xf]
    %v35 = vld [vmem:[%s1 + $0x8] sm:$0xf]
    %v36 = vld [vmem:[%s1 + $0xc] sm:$0xf]
    %v37 = vld [vmem:[%s1 + $0x10] sm:$0xf]
    %v38 = vld [vmem:[%s1 + $0x14] sm:$0xf]
    %v39 = vld [vmem:[%s1 + $0x18] sm:$0xf]
    %v40 = vld [vmem:[%s1 + $0x1c] sm:$0xf]
    %v41 = vld [vmem:[%s1 + $0x20] sm:$0xf]
    %v42 = vld [vmem:[%s1 + $0x24] sm:$0xf]
    %v43 = vld [vmem:[%s1 + $0x28] sm:$0xf]
    %v44 = vld [vmem:[%s1 + $0x2c] sm:$0xf]
    %v45 = vld [vmem:[%s1 + $0x30] sm:$0xf]
    %v46 = vld [vmem:[%s1 + $0x34] sm:$0xf]
    %v47 = vld [vmem:[%s1 + $0x38] sm:$0xf]
    %v48 = vld [vmem:[%s1 + $0x3c] sm:$0xf]
    %v49 = vld [vmem:[%s1 + $0x40] sm:$0xf]
    %v50 = vld [vmem:[%s1 + $0x44] sm:$0xf]
    %v51 = vld [vmem:[%s1 + $0x48] sm:$0xf]
    %v52 = vld [vmem:[%s1 + $0x4c] sm:$0xf]
    %v53 = vld [vmem:[%s1 + $0x50] sm:$0xf]
    %v54 = vld [vmem:[%s1 + $0x54] sm:$0xf]
    %v55 = vld [vmem:[%s1 + $0x58] sm:$0xf]
    %v56 = vld [vmem:[%s1 + $0x5c] sm:$0xf]
    %v57 = vld [vmem:[%s1 + $0x60] sm:$0xf]
    %v58 = vld [vmem:[%s1 + $0x64] sm:$0xf]
    %v59 = vld [vmem:[%s1 + $0x68] sm:$0xf]
    %v60 = vld [vmem:[%s1 + $0x6c] sm:$0xf]
    %v61 = vld [vmem:[%s1 + $0x70] sm:$0xf]
    %v62 = vld [vmem:[%s1 + $0x74] sm:$0xf]
    %v63 = vld [vmem:[%s1 + $0x78] sm:$0xf]
    %v64 = vld [vmem:[%s1 + $0x7c] sm:$0xf]
    %v65 = vld [vmem:[%s1 + $0x80] sm:$0xf]
    %v66 = vld [vmem:[%s1 + $0x84] sm:$0xf]
    %v67 = vld [vmem:[%s1 + $0x88] sm:$0xf]
    %v68 = vld [vmem:[%s1 + $0x8c] sm:$0xf]
    %v69 = vld [vmem:[%s1 + $0x90] sm:$0xf]
    %v70 = vld [vmem:[%s1 + $0x94] sm:$0xf]
    %v71 = vld [vmem:[%s1 + $0x98] sm:$0xf]
    %v72 = vld [vmem:[%s1 + $0x9c] sm:$0xf]
    %v73 = vld [vmem:[%s1 + $0xa0] sm:$0xf]
    %v74 = vld [vmem:[%s1 + $0xa4] sm:$0xf]
    %v75 = vld [vmem:[%s1 + $0xa8] sm:$0xf]
    %v76 = vld [vmem:[%s1 + $0xac] sm:$0xf]
    %v77 = vld [vmem:[%s1 + $0xb0] sm:$0xf]
    %v78 = vld [vmem:[%s1 + $0xb4] sm:$0xf]
    %v79 = vld [vmem:[%s1 + $0xb8] sm:$0xf]
    %v80 = vld [vmem:[%s1 + $0xbc] sm:$0xf]
    %v81 = vld [vmem:[%s1 + $0xc0] sm:$0xf]
    %v82 = vld [vmem:[%s1 + $0xc4] sm:$0xf]
    %v83 = vld [vmem:[%s1 + $0xc8] sm:$0xf]
    %v84 = vld [vmem:[%s1 + $0xcc] sm:$0xf]
    %v85 = vld [vmem:[%s1 + $0xd0] sm:$0xf]
    %v86 = vld [vmem:[%s1 + $0xd4] sm:$0xf]
    %v87 = vld [vmem:[%s1 + $0xd8] sm:$0xf]
    %v88 = vld [vmem:[%s1 + $0xdc] sm:$0xf]
    %v89 = vld [vmem:[%s1 + $0xe0] sm:$0xf]
    %v90 = vld [vmem:[%s1 + $0xe4] sm:$0xf]
    %v91 = vld [vmem:[%s1 + $0xe8] sm:$0xf]
    %v92 = vld [vmem:[%s1 + $0xec] sm:$0xf]
    %v93 = vld [vmem:[%s1 + $0xf0] sm:$0xf]
    %v94 = vld [vmem:[%s1 + $0xf4] sm:$0xf]
    %v95 = vld [vmem:[%s1 + $0xf8] sm:$0xf]
    %v96 = vld [vmem:[%s1 + $0xfc] sm:$0xf]
    %v97 = vld [vmem:[%s1 + $0x100] sm:$0xf]
    %v98 = vld [vmem:[%s1 + $0x104] sm:$0xf]
    %v99 = vld [vmem:[%s1 + $0x108] sm:$0xf]
    %v100 = vld [vmem:[%s1 + $0x10c] sm:$0xf]
    %v101 = vld [vmem:[%s1 + $0x110] sm:$0xf]
    %v102 = vld [vmem:[%s1 + $0x114] sm:$0xf]
    %v103 = vld [vmem:[%s1 + $0x118] sm:$0xf]
    %v104 = vld [vmem:[%s1 + $0x11c] sm:$0xf]
    %v105 = vld [vmem:[%s1 + $0x120] sm:$0xf]
    %v106 = vld [vmem:[%s1 + $0x124] sm:$0xf]
    %v107 = vld [vmem:[%s1 + $0x128] sm:$0xf]
    %v108 = vld [vmem:[%s1 + $0x12c] sm:$0xf]
    %v109 = vld [vmem:[%s1 + $0x130] sm:$0xf]
    %v110 = vld [vmem:[%s1 + $0x134] sm:$0xf]
    %v111 = vld [vmem:[%s1 + $0x138] sm:$0xf]
    %v112 = vld [vmem:[%s1 + $0x13c] sm:$0xf]
    %v113 = vld [vmem:[%s1 + $0x140] sm:$0xf]
    %v114 = vld [vmem:[%s1 + $0x144] sm:$0xf]
    %v115 = vld [vmem:[%s1 + $0x148] sm:$0xf]
    %v116 = vld [vmem:[%s1 + $0x14c] sm:$0xf]
    %v117 = vld [vmem:[%s1 + $0x150] sm:$0xf]
    %v118 = vld [vmem:[%s1 + $0x154] sm:$0xf]
    %v119 = vld [vmem:[%s1 + $0x158] sm:$0xf]
    %v120 = vld [vmem:[%s1 + $0x15c] sm:$0xf]
    %v121 = vld [vmem:[%s1 + $0x160] sm:$0xf]
    %v122 = vld [vmem:[%s1 + $0x164] sm:$0xf]
    %v123 = vld [vmem:[%s1 + $0x168] sm:$0xf]
    %v124 = vld [vmem:[%s1 + $0x16c] sm:$0xf]
    %v125 = vld [vmem:[%s1 + $0x170] sm:$0xf]
    %v126 = vld [vmem:[%s1 + $0x174] sm:$0xf]
    %v127 = vld [vmem:[%s1 + $0x178] sm:$0xf]
    %v128 = vld [vmem:[%s1 + $0x17c] sm:$0xf]
    %v129 = vld [vmem:[%s1 + $0x180] sm:$0xf]
    %v130 = vld [vmem:[%s1 + $0x184] sm:$0xf]
    %v131 = vld [vmem:[%s3] sm:$0x1]
    %v132 = vperm.slane %v131, 0
    %v231 = vunpack.c.l.b16 %v33
    %v232 = vunpack.c.l.b16 %v34
    %v233 = vunpack.c.l.b16 %v35
    %v234 = vunpack.c.l.b16 %v36
    %v235 = vunpack.c.l.b16 %v37
    %v236 = vunpack.c.l.b16 %v38
    %v237 = vunpack.c.l.b16 %v39
    %v238 = vunpack.c.l.b16 %v40
    %v239 = vunpack.c.l.b16 %v41
    %v240 = vunpack.c.l.b16 %v42
    %v241 = vunpack.c.l.b16 %v43
    %v242 = vunpack.c.l.b16 %v44
    %v243 = vunpack.c.l.b16 %v45
    %v244 = vunpack.c.l.b16 %v46
    %v245 = vunpack.c.l.b16 %v47
    %v246 = vunpack.c.l.b16 %v48
    %v247 = vunpack.c.l.b16 %v49
    %v248 = vunpack.c.l.b16 %v50
    %v249 = vunpack.c.l.b16 %v51
    %v250 = vunpack.c.l.b16 %v52
    %v251 = vunpack.c.l.b16 %v53
    %v252 = vunpack.c.l.b16 %v54
    %v253 = vunpack.c.l.b16 %v55
    %v254 = vunpack.c.l.b16 %v56
    %v255 = vunpack.c.l.b16 %v57
    %v256 = vunpack.c.l.b16 %v58
    %v257 = vunpack.c.l.b16 %v59
    %v258 = vunpack.c.l.b16 %v60
    %v259 = vunpack.c.l.b16 %v61
    %v260 = vunpack.c.l.b16 %v62
    %v261 = vunpack.c.l.b16 %v63
    %v262 = vunpack.c.l.b16 %v64
    %v263 = vunpack.c.l.b16 %v65
    %v264 = vunpack.c.l.b16 %v66
    %v265 = vunpack.c.l.b16 %v67
    %v266 = vunpack.c.l.b16 %v68
    %v267 = vunpack.c.l.b16 %v69
    %v268 = vunpack.c.l.b16 %v70
    %v269 = vunpack.c.l.b16 %v71
    %v270 = vunpack.c.l.b16 %v72
    %v271 = vunpack.c.l.b16 %v73
    %v272 = vunpack.c.l.b16 %v74
    %v273 = vunpack.c.l.b16 %v75
    %v274 = vunpack.c.l.b16 %v76
    %v275 = vunpack.c.l.b16 %v77
    %v276 = vunpack.c.l.b16 %v78
    %v277 = vunpack.c.l.b16 %v79
    %v278 = vunpack.c.l.b16 %v80
    %v279 = vunpack.c.l.b16 %v81
    %v280 = vunpack.c.l.b16 %v82
    %v281 = vunpack.c.l.b16 %v83
    %v282 = vunpack.c.l.b16 %v84
    %v283 = vunpack.c.l.b16 %v85
    %v284 = vunpack.c.l.b16 %v86
    %v285 = vunpack.c.l.b16 %v87
    %v286 = vunpack.c.l.b16 %v88
    %v287 = vunpack.c.l.b16 %v89
    %v288 = vunpack.c.l.b16 %v90
    %v289 = vunpack.c.l.b16 %v91
    %v290 = vunpack.c.l.b16 %v92
    %v291 = vunpack.c.l.b16 %v93
    %v292 = vunpack.c.l.b16 %v94
    %v293 = vunpack.c.l.b16 %v95
    %v294 = vunpack.c.l.b16 %v96
    %v295 = vunpack.c.l.b16 %v97
    %v296 = vunpack.c.l.b16 %v98
    %v297 = vunpack.c.l.b16 %v99
    %v298 = vunpack.c.l.b16 %v100
    %v299 = vunpack.c.l.b16 %v101
    %v300 = vunpack.c.l.b16 %v102
    %v301 = vunpack.c.l.b16 %v103
    %v302 = vunpack.c.l.b16 %v104
    %v303 = vunpack.c.l.b16 %v105
    %v304 = vunpack.c.l.b16 %v106
    %v305 = vunpack.c.l.b16 %v107
    %v306 = vunpack.c.l.b16 %v108
    %v307 = vunpack.c.l.b16 %v109
    %v308 = vunpack.c.l.b16 %v110
    %v309 = vunpack.c.l.b16 %v111
    %v310 = vunpack.c.l.b16 %v112
    %v311 = vunpack.c.l.b16 %v113
    %v312 = vunpack.c.l.b16 %v114
    %v313 = vunpack.c.l.b16 %v115
    %v314 = vunpack.c.l.b16 %v116
    %v315 = vunpack.c.l.b16 %v117
    %v316 = vunpack.c.l.b16 %v118
    %v317 = vunpack.c.l.b16 %v119
    %v318 = vunpack.c.l.b16 %v120
    %v319 = vunpack.c.l.b16 %v121
    %v320 = vunpack.c.l.b16 %v122
    %v321 = vunpack.c.l.b16 %v123
    %v322 = vunpack.c.l.b16 %v124
    %v323 = vunpack.c.l.b16 %v125
    %v324 = vunpack.c.l.b16 %v126
    %v325 = vunpack.c.l.b16 %v127
    %v326 = vunpack.c.l.b16 %v128
    %v327 = vunpack.c.l.b16 %v129
    %v328 = vunpack.c.l.b16 %v130
    %v329 = vpack.c.b16 %v232, %v231
    %v330 = vpack.c.b16 %v234, %v233
    %v331 = vpack.c.b16 %v236, %v235
    %v332 = vpack.c.b16 %v238, %v237
    %v333 = vpack.c.b16 %v240, %v239
    %v334 = vpack.c.b16 %v242, %v241
    %v335 = vpack.c.b16 %v244, %v243
    %v336 = vpack.c.b16 %v246, %v245
    %v337 = vpack.c.b16 %v248, %v247
    %v338 = vpack.c.b16 %v250, %v249
    %v339 = vpack.c.b16 %v252, %v251
    %v340 = vpack.c.b16 %v254, %v253
    %v341 = vpack.c.b16 %v256, %v255
    %v342 = vpack.c.b16 %v258, %v257
    %v343 = vpack.c.b16 %v260, %v259
    %v344 = vpack.c.b16 %v262, %v261
    %v345 = vpack.c.b16 %v264, %v263
    %v346 = vpack.c.b16 %v266, %v265
    %v347 = vpack.c.b16 %v268, %v267
    %v348 = vpack.c.b16 %v270, %v269
    %v349 = vpack.c.b16 %v272, %v271
    %v350 = vpack.c.b16 %v274, %v273
    %v351 = vpack.c.b16 %v276, %v275
    %v352 = vpack.c.b16 %v278, %v277
    %v353 = vpack.c.b16 %v280, %v279
    %v354 = vpack.c.b16 %v282, %v281
    %v355 = vpack.c.b16 %v284, %v283
    %v356 = vpack.c.b16 %v286, %v285
    %v357 = vpack.c.b16 %v288, %v287
    %v358 = vpack.c.b16 %v290, %v289
    %v359 = vpack.c.b16 %v292, %v291
    %v360 = vpack.c.b16 %v294, %v293
    %v361 = vpack.c.b16 %v296, %v295
    %v362 = vpack.c.b16 %v298, %v297
    %v363 = vpack.c.b16 %v300, %v299
    %v364 = vpack.c.b16 %v302, %v301
    %v365 = vpack.c.b16 %v304, %v303
    %v366 = vpack.c.b16 %v306, %v305
    %v367 = vpack.c.b16 %v308, %v307
    %v368 = vpack.c.b16 %v310, %v309
    %v369 = vpack.c.b16 %v312, %v311
    %v370 = vpack.c.b16 %v314, %v313
    %v371 = vpack.c.b16 %v316, %v315
    %v372 = vpack.c.b16 %v318, %v317
    %v373 = vpack.c.b16 %v320, %v319
    %v374 = vpack.c.b16 %v322, %v321
    %v375 = vpack.c.b16 %v324, %v323
    %v376 = vpack.c.b16 %v326, %v325
    %v377 = vpack.c.b16 %v328, %v327
    %vm427 = vcmask 130048
    %v429 = vsel %vm427, %v32, 0
    %431 = vmatpush.bf16.msra.mxu0 %v336
    %432 = vmatpush.bf16.msra.mxu0 %v335
    %433 = vmatpush.bf16.msra.mxu0 %v334
    %434 = vmatpush.bf16.msra.mxu0 %v333
    %435 = vmatpush.bf16.msra.mxu0 %v332
    %436 = vmatpush.bf16.msra.mxu0 %v331
    %437 = vmatpush.bf16.msra.mxu0 %v330
    %438 = vmatpush.bf16.msra.mxu0 %v329
    %439 = vmatmul.bf16.gmra.mxu0 %v26
    %v440 = vpop.f32.mrf.mxu0
    %v441 = vadd.f32 %v132, %v440
    %v442 = vpop.f32.mrf.mxu0
    %443 = vdwg.mxu0
    %444 = vmatpush.bf16.msra.mxu0 %v344
    %445 = vmatpush.bf16.msra.mxu0 %v343
    %446 = vmatpush.bf16.msra.mxu0 %v342
    %447 = vmatpush.bf16.msra.mxu0 %v341
    %448 = vmatpush.bf16.msra.mxu0 %v340
    %449 = vmatpush.bf16.msra.mxu0 %v339
    %450 = vmatpush.bf16.msra.mxu0 %v338
    %451 = vmatpush.bf16.msra.mxu0 %v337
    %452 = vmatmul.bf16.gmra.mxu0 %v27
    %v453 = vpop.f32.mrf.mxu0
    %v454 = vadd.f32 %v441, %v453
    %v455 = vpop.f32.mrf.mxu0
    %456 = vdwg.mxu0
    %457 = vmatpush.bf16.msra.mxu0 %v352
    %458 = vmatpush.bf16.msra.mxu0 %v351
    %459 = vmatpush.bf16.msra.mxu0 %v350
    %460 = vmatpush.bf16.msra.mxu0 %v349
    %461 = vmatpush.bf16.msra.mxu0 %v348
    %462 = vmatpush.bf16.msra.mxu0 %v347
    %463 = vmatpush.bf16.msra.mxu0 %v346
    %464 = vmatpush.bf16.msra.mxu0 %v345
    %465 = vmatmul.bf16.gmra.mxu0 %v28
    %v466 = vpop.f32.mrf.mxu0
    %v467 = vadd.f32 %v454, %v466
    %v468 = vpop.f32.mrf.mxu0
    %469 = vdwg.mxu0
    %470 = vmatpush.bf16.msra.mxu0 %v360
    %471 = vmatpush.bf16.msra.mxu0 %v359
    %472 = vmatpush.bf16.msra.mxu0 %v358
    %473 = vmatpush.bf16.msra.mxu0 %v357
    %474 = vmatpush.bf16.msra.mxu0 %v356
    %475 = vmatpush.bf16.msra.mxu0 %v355
    %476 = vmatpush.bf16.msra.mxu0 %v354
    %477 = vmatpush.bf16.msra.mxu0 %v353
    %478 = vmatmul.bf16.gmra.mxu0 %v29
    %v479 = vpop.f32.mrf.mxu0
    %v480 = vadd.f32 %v467, %v479
    %v481 = vpop.f32.mrf.mxu0
    %482 = vdwg.mxu0
    %483 = vmatpush.bf16.msra.mxu0 %v368
    %484 = vmatpush.bf16.msra.mxu0 %v367
    %485 = vmatpush.bf16.msra.mxu0 %v366
    %486 = vmatpush.bf16.msra.mxu0 %v365
    %487 = vmatpush.bf16.msra.mxu0 %v364
    %488 = vmatpush.bf16.msra.mxu0 %v363
    %489 = vmatpush.bf16.msra.mxu0 %v362
    %490 = vmatpush.bf16.msra.mxu0 %v361
    %491 = vmatmul.bf16.gmra.mxu0 %v30
    %v492 = vpop.f32.mrf.mxu0
    %v493 = vadd.f32 %v480, %v492
    %v494 = vpop.f32.mrf.mxu0
    %495 = vdwg.mxu0
    %496 = vmatpush.bf16.msra.mxu0 %v376
    %497 = vmatpush.bf16.msra.mxu0 %v375
    %498 = vmatpush.bf16.msra.mxu0 %v374
    %499 = vmatpush.bf16.msra.mxu0 %v373
    %500 = vmatpush.bf16.msra.mxu0 %v372
    %501 = vmatpush.bf16.msra.mxu0 %v371
    %502 = vmatpush.bf16.msra.mxu0 %v370
    %503 = vmatpush.bf16.msra.mxu0 %v369
    %504 = vmatmul.bf16.gmra.mxu0 %v31
    %v505 = vpop.f32.mrf.mxu0
    %v506 = vadd.f32 %v493, %v505
    %v507 = vpop.f32.mrf.mxu0
    %508 = vdwg.mxu0
    %509 = vmatpush.bf16.msra.mxu0 0
    %510 = vmatpush.bf16.msra.mxu0 0
    %511 = vmatpush.bf16.msra.mxu0 0
    %512 = vmatpush.bf16.msra.mxu0 0
    %513 = vmatpush.bf16.msra.mxu0 0
    %514 = vmatpush.bf16.msra.mxu0 0
    %515 = vmatpush.bf16.msra.mxu0 0
    %516 = vmatpush.bf16.msra.mxu0 %v377
    %517 = vmatmul.bf16.gmra.mxu0 %v429
    %v518 = vpop.f32.mrf.mxu0
    %v519 = vadd.f32 %v506, %v518
    %v520 = vpop.f32.mrf.mxu0
    %521 = vdwg.mxu0
    %v522 = vmax.f32 %v519, 0.0
    %s523 = smul.u32 0, 8
    %s524 = scalar_lea.vmem [#allocation2], %s523
    %525 = vst.msk [vmem:[%s524] sm:$0xff] %vm427, %v522
    %p526 = scmp.eq.s32.totalorder 0, 0
    // Predicated region
    $region18: #{tpu_custom_call.1} parent=1 // pred_check
      %p527 = pneg %p526
    $region19: #{tpu_custom_call.1} parent=1 // pred_check_branch
      %529 = sbr.rel (%p527) target = $region21
    $region20: #{tpu_custom_call.1} parent=1 // pred_region
      %v530 = vld [vmem:[#allocation2] sm:$0xff]
      %v531 = vld [vmem:[%s3 + $0x1] sm:$0x1]
      %v532 = vld [vmem:[%s3 + $0x2] sm:$0x1]
      %v533 = vsel %vm427, %v530, 0.0
      %v534 = vrot.slane %v533, 4
      %v535 = vadd.f32 %v533, %v534
      %v536 = vrot.slane %v535, 2
      %v537 = vadd.f32 %v535, %v536
      %v538 = vrot.slane %v537, 1
      %v539 = vadd.f32 %v537, %v538
      %v540 = vmul.f32 %v539, 0.125
      %v541 = vsub.f32 %v530, %v540
      %v542 = vmul.f32 %v541, %v541
      %v543 = vsel %vm427, %v542, 0.0
      %v544 = vrot.slane %v543, 4
      %v545 = vadd.f32 %v543, %v544
      %v546 = vrot.slane %v545, 2
      %v547 = vadd.f32 %v545, %v546
      %v548 = vrot.slane %v547, 1
      %v549 = vadd.f32 %v547, %v548
      %v550 = vmul.f32 %v549, 0.125
      %v551 = vadd.f32 %v550, 1e-05
      %v552 = vrsqrt.pop %v551
      %v553 = vmul.f32 %v552, %v551
      %v554 = vmul.f32 %v553, %v552
      %v555 = vmul.f32 0.5, %v554
      %v556 = vsub.f32 1.5, %v555
      %v557 = vmul.f32 %v552, %v556
      %vm558 = vweird.f32 %v551
      %vm559 = vweird.f32 %v552
      %vm560 = vmor %vm558, %vm559
      %v561 = vsel %vm560, %v552, %v557
      %v562 = vmul.f32 %v531, %v561
      %v563 = vperm.slane %v562, 0
      %v564 = vmul.f32 %v530, %v563
      %v565 = vmul.f32 %v540, %v562
      %v566 = vsub.f32 %v532, %v565
      %v567 = vperm.slane %v566, 0
      %v568 = vadd.f32 %v564, %v567
      %v569 = vpack.c.bf16 %v568, %v568
      %v570 = vld [vmem:[%s2] sm:$0xf]
      %v571 = vld [vmem:[%s2 + $0x4] sm:$0xf]
      %v572 = vld [vmem:[%s3 + $0x3] sm:$0x1]
      %v573 = vperm.slane %v572, 0
      %v576 = vunpack.c.l.b16 %v570
      %v577 = vunpack.c.l.b16 %v571
      %v578 = vpack.c.b16 %v577, %v576
      %v581 = vsel %vm427, %v569, 0
      %583 = vmatpush.bf16.msra.mxu0 0
      %584 = vmatpush.bf16.msra.mxu0 0
      %585 = vmatpush.bf16.msra.mxu0 0
      %586 = vmatpush.bf16.msra.mxu0 0
      %587 = vmatpush.bf16.msra.mxu0 0
      %588 = vmatpush.bf16.msra.mxu0 0
      %589 = vmatpush.bf16.msra.mxu0 0
      %590 = vmatpush.bf16.msra.mxu0 %v578
      %591 = vmatmul.bf16.gmra.mxu0 %v581
      %v592 = vpop.f32.mrf.mxu0
      %v593 = vadd.f32 %v573, %v592
      %v594 = vpop.f32.mrf.mxu0
      %595 = vdwg.mxu0
      %v596 = vmax.f32 %v593, 0.0
      %v597 = vld [vmem:[%s3 + $0x4] sm:$0x1]
      %v598 = vld [vmem:[%s3 + $0x5] sm:$0x1]
      %vm599 = vcmask 261120
      %v600 = vsel %vm599, %v596, 0.0
      %v601 = vrot.slane %v600, 4
      %v602 = vadd.f32 %v600, %v601
      %v603 = vrot.slane %v602, 2
      %v604 = vadd.f32 %v602, %v603
      %v605 = vrot.slane %v604, 1
      %v606 = vadd.f32 %v604, %v605
      %v607 = vmul.f32 %v606, 0.125
      %v608 = vsub.f32 %v596, %v607
      %v609 = vmul.f32 %v608, %v608
      %v610 = vsel %vm599, %v609, 0.0
      %v611 = vrot.slane %v610, 4
      %v612 = vadd.f32 %v610, %v611
      %v613 = vrot.slane %v612, 2
      %v614 = vadd.f32 %v612, %v613
      %v615 = vrot.slane %v614, 1
      %v616 = vadd.f32 %v614, %v615
      %v617 = vmul.f32 %v616, 0.125
      %v618 = vadd.f32 %v617, 1e-05
      %v619 = vrsqrt.pop %v618
      %v620 = vmul.f32 %v619, %v618
      %v621 = vmul.f32 %v620, %v619
      %v622 = vmul.f32 0.5, %v621
      %v623 = vsub.f32 1.5, %v622
      %v624 = vmul.f32 %v619, %v623
      %vm625 = vweird.f32 %v618
      %vm626 = vweird.f32 %v619
      %vm627 = vmor %vm625, %vm626
      %v628 = vsel %vm627, %v619, %v624
      %v629 = vmul.f32 %v597, %v628
      %v630 = vperm.slane %v629, 0
      %v631 = vmul.f32 %v596, %v630
      %v632 = vmul.f32 %v607, %v629
      %v633 = vsub.f32 %v598, %v632
      %v634 = vperm.slane %v633, 0
      %v635 = vadd.f32 %v631, %v634
      %v636 = vpack.c.bf16 %v635, %v635
      %v637 = vld [vmem:[%s2 + $0x8] sm:$0xf]
      %v638 = vld [vmem:[%s2 + $0xc] sm:$0xf]
      %v639 = vld [vmem:[%s2 + $0x10] sm:$0xf]
      %v640 = vld [vmem:[%s2 + $0x14] sm:$0xf]
      %v641 = vld [vmem:[%s3 + $0x6] sm:$0x1]
      %v642 = vperm.slane %v641, 0
      %v647 = vunpack.c.l.b16 %v637
      %v648 = vunpack.c.l.b16 %v638
      %v649 = vunpack.c.l.b16 %v639
      %v650 = vunpack.c.l.b16 %v640
      %v651 = vpack.c.b16 %v648, %v647
      %v652 = vpack.c.b16 %v650, %v649
      %v656 = vsel %vm599, %v636, 0
      %658 = vmatpush.bf16.msra.mxu0 0
      %659 = vmatpush.bf16.msra.mxu0 0
      %660 = vmatpush.bf16.msra.mxu0 0
      %661 = vmatpush.bf16.msra.mxu0 0
      %662 = vmatpush.bf16.msra.mxu0 0
      %663 = vmatpush.bf16.msra.mxu0 0
      %664 = vmatpush.bf16.msra.mxu0 %v652
      %665 = vmatpush.bf16.msra.mxu0 %v651
      %666 = vmatmul.bf16.gmra.mxu0 %v656
      %v667 = vpop.f32.mrf.mxu0
      %v668 = vadd.f32 %v642, %v667
      %v669 = vpop.f32.mrf.mxu0
      %670 = vdwg.mxu0
      %v671 = vmax.f32 %v668, 0.0
      %v672 = vld [vmem:[%s3 + $0x7] sm:$0x1]
      %v673 = vld [vmem:[%s3 + $0x8] sm:$0x1]
      %vm674 = vcmask 195584
      %v675 = vsel %vm674, %v671, 0.0
      %v676 = vrot.slane %v675, 4
      %v677 = vadd.f32 %v675, %v676
      %v678 = vrot.slane %v677, 2
      %v679 = vadd.f32 %v677, %v678
      %v680 = vrot.slane %v679, 1
      %v681 = vadd.f32 %v679, %v680
      %v682 = vmul.f32 %v681, 0.125
      %v683 = vsub.f32 %v671, %v682
      %v684 = vmul.f32 %v683, %v683
      %v685 = vsel %vm674, %v684, 0.0
      %v686 = vrot.slane %v685, 4
      %v687 = vadd.f32 %v685, %v686
      %v688 = vrot.slane %v687, 2
      %v689 = vadd.f32 %v687, %v688
      %v690 = vrot.slane %v689, 1
      %v691 = vadd.f32 %v689, %v690
      %v692 = vmul.f32 %v691, 0.125
      %v693 = vadd.f32 %v692, 1e-05
      %v694 = vrsqrt.pop %v693
      %v695 = vmul.f32 %v694, %v693
      %v696 = vmul.f32 %v695, %v694
      %v697 = vmul.f32 0.5, %v696
      %v698 = vsub.f32 1.5, %v697
      %v699 = vmul.f32 %v694, %v698
      %vm700 = vweird.f32 %v693
      %vm701 = vweird.f32 %v694
      %vm702 = vmor %vm700, %vm701
      %v703 = vsel %vm702, %v694, %v699
      %v704 = vmul.f32 %v672, %v703
      %v705 = vperm.slane %v704, 0
      %v706 = vmul.f32 %v671, %v705
      %v707 = vmul.f32 %v682, %v704
      %v708 = vsub.f32 %v673, %v707
      %v709 = vperm.slane %v708, 0
      %v710 = vadd.f32 %v706, %v709
      %v711 = vpack.c.bf16 %v710, %v710
      %v712 = vld [vmem:[%s2 + $0x18] sm:$0xf]
      %v713 = vld [vmem:[%s2 + $0x1c] sm:$0xf]
      %v714 = vld [vmem:[%s2 + $0x20] sm:$0xf]
      %v715 = vld [vmem:[%s3 + $0x9] sm:$0x1]
      %v716 = vperm.slane %v715, 0
      %v720 = vunpack.c.l.b16 %v712
      %v721 = vunpack.c.l.b16 %v713
      %v722 = vunpack.c.l.b16 %v714
      %v723 = vpack.c.b16 %v721, %v720
      %v724 = vpack.c.b16 %v722, %v722
      %v727 = vsel %vm674, %v711, 0
      %vm729 = vcmask 1043456
      %v731 = vsel %vm729, %v724, 0
      %733 = vmatpush.bf16.msra.mxu0 0
      %734 = vmatpush.bf16.msra.mxu0 0
      %735 = vmatpush.bf16.msra.mxu0 0
      %736 = vmatpush.bf16.msra.mxu0 0
      %737 = vmatpush.bf16.msra.mxu0 0
      %738 = vmatpush.bf16.msra.mxu0 0
      %739 = vmatpush.bf16.msra.mxu0 %v731
      %740 = vmatpush.bf16.msra.mxu0 %v723
      %741 = vmatmul.bf16.gmra.mxu0 %v727
      %v742 = vpop.f32.mrf.mxu0
      %v743 = vadd.f32 %v716, %v742
      %v744 = vpop.f32.mrf.mxu0
      %745 = vdwg.mxu0
      %746 = vst [vmem:[#allocation3] sm:$0xff] %v743
    $region21: #{tpu_custom_call.1} parent=1 // pred_fallthru
      _
    // Predicated region
    $region22: #{tpu_custom_call.1} parent=1 // pred_check
      _
    $region23: #{tpu_custom_call.1} parent=1 // pred_check_branch
      %748 = sbr.rel (0) target = $region25
    $region24: #{tpu_custom_call.1} parent=1 // pred_region
      %750 = vsyncadd [#allocation4], 0
      %s752 = sshll.u32 [#allocation3], 4
      %s753 = int_to_ptr.vmem [resolvable:$true] %s752
      %s754 = sshll.u32 %s4, 4
      %s755 = int_to_ptr.hbm [resolvable:$true] %s754
      %757 = dma.vmem_to_hbm [thread:$0]  %s753, 128, %s755, [#allocation4]
    $region25: #{tpu_custom_call.1} parent=1 // pred_fallthru
      _
    // Predicated region
    $region26: #{tpu_custom_call.1} parent=1 // pred_check
      _
    $region27: #{tpu_custom_call.1} parent=1 // pred_check_branch
      %759 = sbr.rel (0) target = $region29
    $region28: #{tpu_custom_call.1} parent=1 // pred_region
      %761 = dma.done [#allocation4], 128
    $region29: #{tpu_custom_call.1} parent=1 // pred_fallthru
      _
    %762 = vsyncpa [#allocation4], 1

</llo_original>
